<compile_context>
chip_gen: v7x
topology: tpu7x:2x2x1
jax: 0.10.0
libtpu: 0.0.40
codegen_flags: <defaults>
</compile_context>

<pallas_src>
import functools

import jax
import jax.numpy as jnp
from jax.experimental import pallas as pl
from jax.experimental.pallas import tpu as pltpu


# ----------------------------------------------------------------------------
# Fused kernel: normalize both point halves of one batch block.
#   pts_ref  : (4, TB, N)   channel-major rows (x1, y1, x2, y2); points on lanes
#   p1_ref   : (TB, 3, N)   normalized homogeneous pts1
#   p2_ref   : (TB, 3, N)   normalized homogeneous pts2
#   stats_ref: (TB, 8)      (cx1, cy1, s1, cx2, cy2, s2, 0, 0)
# ----------------------------------------------------------------------------
def _normalize_kernel(pts_ref, p1_ref, p2_ref, stats_ref):
    n = pts_ref.shape[-1]
    inv_n = 1.0 / n

    def hartley(x, y, p_ref):
        # per-batch means over N points: dense lane (XLU) reductions on (TB, N) tiles
        cx = jnp.sum(x, axis=-1, keepdims=True) * inv_n          # (TB, 1)
        cy = jnp.sum(y, axis=-1, keepdims=True) * inv_n
        dx = x - cx                                              # (TB, N), dense vregs
        dy = y - cy
        meandist = jnp.sum(jnp.sqrt(dx * dx + dy * dy), axis=-1, keepdims=True) * inv_n
        scale = 1.0 / meandist                                   # exact (also feeds T1/T2)
        # T @ [x; y; 1] applied as broadcast multiplies; rows stored directly (no concat temp)
        p_ref[:, 0, :] = scale * dx
        p_ref[:, 1, :] = scale * dy
        p_ref[:, 2, :] = jnp.ones_like(x)
        # TODO(synk): drop this constant ones row (~20% of HBM traffic) if the downstream
        # consumer can imply/append it instead.
        return cx, cy, scale

    cx1, cy1, s1 = hartley(pts_ref[0], pts_ref[1], p1_ref)
    cx2, cy2, s2 = hartley(pts_ref[2], pts_ref[3], p2_ref)

    zero = jnp.zeros_like(s1)
    stats_ref[...] = jnp.concatenate(
        [cx1, cy1, s1, cx2, cy2, s2, zero, zero], axis=-1)       # (TB, 8)


def _build_T(scale, c0, c1):
    """Assemble the 3x3 normalization matrix [B,3,3] from per-batch scalars."""
    zeros = jnp.zeros_like(scale)
    ones = jnp.ones_like(scale)
    row0 = jnp.stack([scale, zeros, -c0 * scale], axis=-1)
    row1 = jnp.stack([zeros, scale, -c1 * scale], axis=-1)
    row2 = jnp.stack([zeros, zeros, ones], axis=-1)
    return jnp.stack([row0, row1, row2], axis=1)


def _pick_block_b(B, N):
    """Batch rows per grid step.

    Legal values: B itself, or a multiple of 8 that divides B (the second-minor block dim must be
    8-divisible or span the full axis).  Prefer >= 4 grid steps (pipeline depth + v7x megacore
    split) while keeping the per-step double-buffered VMEM footprint around <= 8 MiB (safe under
    v5e's 16 MiB scoped default and v7x's 64 MiB physical VMEM).
    """
    if B % 8 != 0:
        return B
    # per batch row: input 4 rows + two 8-sublane-padded (3->8, N) output tiles, f32, x2 buffers
    bytes_per_b = (4 + 8 + 8) * N * 4 * 2
    budget = 8 * 1024 * 1024
    cands = [b for b in range(8, B + 1, 8) if B % b == 0]
    fit = [b for b in cands if b * bytes_per_b <= budget]
    if not fit:
        return 8
    deep = [b for b in fit if B // b >= 4]
    return max(deep) if deep else min(fit)


@functools.partial(jax.jit, static_argnames=("block_b", "channels_first"))
def normalize_and_expand(pts, block_b=None, channels_first=False):
    """NormalizeAndExpand.forward.

    pts: [B, N, 4] with columns (x1, y1, x2, y2)  (PyTorch-native layout), or
         [4, B, N] with channels_first=True (skips the layout-change HBM pass entirely).
    Returns (pts1 [B,3,N], pts2 [B,3,N], T1 [B,3,3], T2 [B,3,3]).
    """
    if channels_first:
        pts_cm = pts.astype(jnp.float32)                         # [4, B, N]
        C, B, N = pts_cm.shape
    else:
        B, N, C = pts.shape
        pts_cm = jnp.transpose(pts.astype(jnp.float32), (2, 0, 1))  # [4, B, N]
    assert C == 4

    if block_b is None:
        block_b = _pick_block_b(B, N)
    assert B % block_b == 0 and (block_b % 8 == 0 or block_b == B)
    grid = (B // block_b,)

    out_shape = (jax.ShapeDtypeStruct((B, 3, N), jnp.float32),
                 jax.ShapeDtypeStruct((B, 3, N), jnp.float32),
                 jax.ShapeDtypeStruct((B, 8), jnp.float32))

    p1, p2, stats = pl.pallas_call(
        _normalize_kernel,
        out_shape=out_shape,
        grid=grid,
        in_specs=[pl.BlockSpec((4, block_b, N), lambda b: (0, b, 0))],
        out_specs=(pl.BlockSpec((block_b, 3, N), lambda b: (b, 0, 0)),
                   pl.BlockSpec((block_b, 3, N), lambda b: (b, 0, 0)),
                   pl.BlockSpec((block_b, 8), lambda b: (b, 0))),
        compiler_params=pltpu.CompilerParams(dimension_semantics=("parallel",)),
    )(pts_cm)

    # 3x3 T matrices: tiny XLA glue (B x 9 floats) from the kernel-emitted stats.
    T1 = _build_T(stats[:, 2], stats[:, 0], stats[:, 1])
    T2 = _build_T(stats[:, 5], stats[:, 3], stats[:, 4])
    return p1, p2, T1, T2


if __name__ == "__main__":
    # pure-JAX reference mirroring the PyTorch module
    def ref(pts):
        def norm(xy):
            ones = jnp.ones(xy.shape[:2] + (1,), xy.dtype)
            p = jnp.concatenate([xy, ones], -1)                          # [B,N,3]
            c = jnp.mean(p, axis=1)                                      # [B,3]
            newp = p - c[:, None, :]
            meandist = jnp.mean(jnp.sqrt(jnp.sum(newp[..., :2] ** 2, -1)), axis=1)
            sc = 1.0 / meandist
            T = _build_T(sc, c[:, 0], c[:, 1])
            out = jnp.einsum('bij,bnj->bin', T, p,
                             precision=jax.lax.Precision.HIGHEST)
            return out, T
        r1, rT1 = norm(pts[..., :2])
        r2, rT2 = norm(pts[..., 2:])
        return r1, r2, rT1, rT2

    def check(B, N, key):
        H_img, W_img = 240.0, 320.0
        coord_scale = jnp.array([W_img, H_img, W_img, H_img], jnp.float32)
        pts = jax.random.uniform(key, (B, N, 4), jnp.float32) * coord_scale

        pts1, pts2, T1, T2 = normalize_and_expand(pts)
        jax.block_until_ready((pts1, pts2, T1, T2))

        r1, r2, rT1, rT2 = ref(pts)
        assert bool(jnp.allclose(pts1, r1, rtol=1e-4, atol=1e-4))
        assert bool(jnp.allclose(pts2, r2, rtol=1e-4, atol=1e-4))
        assert bool(jnp.allclose(T1, rT1, rtol=1e-4, atol=1e-5))
        assert bool(jnp.allclose(T2, rT2, rtol=1e-4, atol=1e-5))

        # channel-major fast path (upstream already emits [4,B,N]; no wrapper transpose)
        pts_cm = jnp.transpose(pts, (2, 0, 1))
        q1, q2, S1, S2 = normalize_and_expand(pts_cm, channels_first=True)
        jax.block_until_ready((q1, q2, S1, S2))
        assert bool(jnp.allclose(q1, pts1, rtol=1e-6, atol=1e-6))
        assert bool(jnp.allclose(S1, T1, rtol=1e-6, atol=1e-6))

    key = jax.random.PRNGKey(0)
    k1, k2 = jax.random.split(key)
    check(32, 256, k1)   # block_b=8 -> 4 pipelined grid steps (dense 8-sublane tiles)
    check(2, 128, k2)    # tiny-batch path (block_b == B, single step)

    print("KERNEL_OK")
</pallas_src>

<mosaic_0001>
module attributes {stable_mosaic.version = 11 : i64} {
  func.func @_normalize_kernel(%arg0: i32, %arg1: memref<4x8x256xf32, #tpu.memory_space<vmem>>, %arg2: memref<8x3x256xf32, #tpu.memory_space<vmem>>, %arg3: memref<8x3x256xf32, #tpu.memory_space<vmem>>, %arg4: memref<8x8xf32, #tpu.memory_space<vmem>>) attributes {dimension_semantics = [#tpu.dimension_semantics<parallel>], iteration_bounds = array<i64: 4>, scalar_prefetch = 0 : i64, scratch_operands = 0 : i64, tpu.core_type = #tpu.core_type<tc>, window_params = [{transform_indices = @transform_0, window_bounds = array<i64: 4, 8, 256>}, {transform_indices = @transform_1, window_bounds = array<i64: 8, 3, 256>}, {transform_indices = @transform_2, window_bounds = array<i64: 8, 3, 256>}, {transform_indices = @transform_3, window_bounds = array<i64: 8, 8>}]} {
    %c0 = arith.constant 0 : index
    %c0_0 = arith.constant 0 : index
    %c0_1 = arith.constant 0 : index
    %0 = vector.load %arg1[%c0, %c0_0, %c0_1] : memref<4x8x256xf32, #tpu.memory_space<vmem>>, vector<1x8x256xf32>
    %1 = vector.shape_cast %0 : vector<1x8x256xf32> to vector<8x256xf32>
    %c1 = arith.constant 1 : index
    %c0_2 = arith.constant 0 : index
    %c0_3 = arith.constant 0 : index
    %2 = vector.load %arg1[%c1, %c0_2, %c0_3] : memref<4x8x256xf32, #tpu.memory_space<vmem>>, vector<1x8x256xf32>
    %3 = vector.shape_cast %2 : vector<1x8x256xf32> to vector<8x256xf32>
    %cst = arith.constant dense<0.000000e+00> : vector<8xf32>
    %4 = vector.multi_reduction <add>, %1, %cst [1] : vector<8x256xf32> to vector<8xf32>
    %5 = vector.shape_cast %4 : vector<8xf32> to vector<8x1xf32>
    %cst_4 = arith.constant 3.906250e-03 : f32
    %6 = vector.broadcast %cst_4 : f32 to vector<8x1xf32>
    %7 = arith.mulf %5, %6 : vector<8x1xf32>
    %cst_5 = arith.constant dense<0.000000e+00> : vector<8xf32>
    %8 = vector.multi_reduction <add>, %3, %cst_5 [1] : vector<8x256xf32> to vector<8xf32>
    %9 = vector.shape_cast %8 : vector<8xf32> to vector<8x1xf32>
    %cst_6 = arith.constant 3.906250e-03 : f32
    %10 = vector.broadcast %cst_6 : f32 to vector<8x1xf32>
    %11 = arith.mulf %9, %10 : vector<8x1xf32>
    %12 = vector.broadcast %7 : vector<8x1xf32> to vector<8x256xf32>
    %13 = arith.subf %1, %12 : vector<8x256xf32>
    %14 = vector.broadcast %11 : vector<8x1xf32> to vector<8x256xf32>
    %15 = arith.subf %3, %14 : vector<8x256xf32>
    %16 = arith.mulf %13, %13 : vector<8x256xf32>
    %17 = arith.mulf %15, %15 : vector<8x256xf32>
    %18 = arith.addf %16, %17 : vector<8x256xf32>
    %19 = math.sqrt %18 : vector<8x256xf32>
    %cst_7 = arith.constant dense<0.000000e+00> : vector<8xf32>
    %20 = vector.multi_reduction <add>, %19, %cst_7 [1] : vector<8x256xf32> to vector<8xf32>
    %21 = vector.shape_cast %20 : vector<8xf32> to vector<8x1xf32>
    %cst_8 = arith.constant 3.906250e-03 : f32
    %22 = vector.broadcast %cst_8 : f32 to vector<8x1xf32>
    %23 = arith.mulf %21, %22 : vector<8x1xf32>
    %cst_9 = arith.constant 1.000000e+00 : f32
    %24 = vector.broadcast %cst_9 : f32 to vector<8x1xf32>
    %25 = arith.divf %24, %23 : vector<8x1xf32>
    %26 = vector.broadcast %25 : vector<8x1xf32> to vector<8x256xf32>
    %27 = arith.mulf %26, %13 : vector<8x256xf32>
    %c0_10 = arith.constant 0 : index
    %c0_11 = arith.constant 0 : index
    %c0_12 = arith.constant 0 : index
    %28 = vector.load %arg2[%c0_10, %c0_11, %c0_12] : memref<8x3x256xf32, #tpu.memory_space<vmem>>, vector<8x1x256xf32>
    %29 = vector.shape_cast %28 : vector<8x1x256xf32> to vector<8x256xf32>
    %30 = vector.shape_cast %27 : vector<8x256xf32> to vector<8x1x256xf32>
    tpu.vector_store %arg2[%c0_10, %c0_11, %c0_12], %30 {strides = array<i32>} : memref<8x3x256xf32, #tpu.memory_space<vmem>>, vector<8x1x256xf32>,
    %31 = vector.broadcast %25 : vector<8x1xf32> to vector<8x256xf32>
    %32 = arith.mulf %31, %15 : vector<8x256xf32>
    %c0_13 = arith.constant 0 : index
    %c1_14 = arith.constant 1 : index
    %c0_15 = arith.constant 0 : index
    %33 = vector.load %arg2[%c0_13, %c1_14, %c0_15] : memref<8x3x256xf32, #tpu.memory_space<vmem>>, vector<8x1x256xf32>
    %34 = vector.shape_cast %33 : vector<8x1x256xf32> to vector<8x256xf32>
    %35 = vector.shape_cast %32 : vector<8x256xf32> to vector<8x1x256xf32>
    tpu.vector_store %arg2[%c0_13, %c1_14, %c0_15], %35 {strides = array<i32>} : memref<8x3x256xf32, #tpu.memory_space<vmem>>, vector<8x1x256xf32>,
    %cst_16 = arith.constant 1.000000e+00 : f32
    %36 = vector.broadcast %cst_16 : f32 to vector<8x256xf32>
    %c0_17 = arith.constant 0 : index
    %c2 = arith.constant 2 : index
    %c0_18 = arith.constant 0 : index
    %37 = vector.load %arg2[%c0_17, %c2, %c0_18] : memref<8x3x256xf32, #tpu.memory_space<vmem>>, vector<8x1x256xf32>
    %38 = vector.shape_cast %37 : vector<8x1x256xf32> to vector<8x256xf32>
    %39 = vector.shape_cast %36 : vector<8x256xf32> to vector<8x1x256xf32>
    tpu.vector_store %arg2[%c0_17, %c2, %c0_18], %39 {strides = array<i32>} : memref<8x3x256xf32, #tpu.memory_space<vmem>>, vector<8x1x256xf32>,
    %c2_19 = arith.constant 2 : index
    %c0_20 = arith.constant 0 : index
    %c0_21 = arith.constant 0 : index
    %40 = vector.load %arg1[%c2_19, %c0_20, %c0_21] : memref<4x8x256xf32, #tpu.memory_space<vmem>>, vector<1x8x256xf32>
    %41 = vector.shape_cast %40 : vector<1x8x256xf32> to vector<8x256xf32>
    %c3 = arith.constant 3 : index
    %c0_22 = arith.constant 0 : index
    %c0_23 = arith.constant 0 : index
    %42 = vector.load %arg1[%c3, %c0_22, %c0_23] : memref<4x8x256xf32, #tpu.memory_space<vmem>>, vector<1x8x256xf32>
    %43 = vector.shape_cast %42 : vector<1x8x256xf32> to vector<8x256xf32>
    %cst_24 = arith.constant dense<0.000000e+00> : vector<8xf32>
    %44 = vector.multi_reduction <add>, %41, %cst_24 [1] : vector<8x256xf32> to vector<8xf32>
    %45 = vector.shape_cast %44 : vector<8xf32> to vector<8x1xf32>
    %cst_25 = arith.constant 3.906250e-03 : f32
    %46 = vector.broadcast %cst_25 : f32 to vector<8x1xf32>
    %47 = arith.mulf %45, %46 : vector<8x1xf32>
    %cst_26 = arith.constant dense<0.000000e+00> : vector<8xf32>
    %48 = vector.multi_reduction <add>, %43, %cst_26 [1] : vector<8x256xf32> to vector<8xf32>
    %49 = vector.shape_cast %48 : vector<8xf32> to vector<8x1xf32>
    %cst_27 = arith.constant 3.906250e-03 : f32
    %50 = vector.broadcast %cst_27 : f32 to vector<8x1xf32>
    %51 = arith.mulf %49, %50 : vector<8x1xf32>
    %52 = vector.broadcast %47 : vector<8x1xf32> to vector<8x256xf32>
    %53 = arith.subf %41, %52 : vector<8x256xf32>
    %54 = vector.broadcast %51 : vector<8x1xf32> to vector<8x256xf32>
    %55 = arith.subf %43, %54 : vector<8x256xf32>
    %56 = arith.mulf %53, %53 : vector<8x256xf32>
    %57 = arith.mulf %55, %55 : vector<8x256xf32>
    %58 = arith.addf %56, %57 : vector<8x256xf32>
    %59 = math.sqrt %58 : vector<8x256xf32>
    %cst_28 = arith.constant dense<0.000000e+00> : vector<8xf32>
    %60 = vector.multi_reduction <add>, %59, %cst_28 [1] : vector<8x256xf32> to vector<8xf32>
    %61 = vector.shape_cast %60 : vector<8xf32> to vector<8x1xf32>
    %cst_29 = arith.constant 3.906250e-03 : f32
    %62 = vector.broadcast %cst_29 : f32 to vector<8x1xf32>
    %63 = arith.mulf %61, %62 : vector<8x1xf32>
    %cst_30 = arith.constant 1.000000e+00 : f32
    %64 = vector.broadcast %cst_30 : f32 to vector<8x1xf32>
    %65 = arith.divf %64, %63 : vector<8x1xf32>
    %66 = vector.broadcast %65 : vector<8x1xf32> to vector<8x256xf32>
    %67 = arith.mulf %66, %53 : vector<8x256xf32>
    %c0_31 = arith.constant 0 : index
    %c0_32 = arith.constant 0 : index
    %c0_33 = arith.constant 0 : index
    %68 = vector.load %arg3[%c0_31, %c0_32, %c0_33] : memref<8x3x256xf32, #tpu.memory_space<vmem>>, vector<8x1x256xf32>
    %69 = vector.shape_cast %68 : vector<8x1x256xf32> to vector<8x256xf32>
    %70 = vector.shape_cast %67 : vector<8x256xf32> to vector<8x1x256xf32>
    tpu.vector_store %arg3[%c0_31, %c0_32, %c0_33], %70 {strides = array<i32>} : memref<8x3x256xf32, #tpu.memory_space<vmem>>, vector<8x1x256xf32>,
    %71 = vector.broadcast %65 : vector<8x1xf32> to vector<8x256xf32>
    %72 = arith.mulf %71, %55 : vector<8x256xf32>
    %c0_34 = arith.constant 0 : index
    %c1_35 = arith.constant 1 : index
    %c0_36 = arith.constant 0 : index
    %73 = vector.load %arg3[%c0_34, %c1_35, %c0_36] : memref<8x3x256xf32, #tpu.memory_space<vmem>>, vector<8x1x256xf32>
    %74 = vector.shape_cast %73 : vector<8x1x256xf32> to vector<8x256xf32>
    %75 = vector.shape_cast %72 : vector<8x256xf32> to vector<8x1x256xf32>
    tpu.vector_store %arg3[%c0_34, %c1_35, %c0_36], %75 {strides = array<i32>} : memref<8x3x256xf32, #tpu.memory_space<vmem>>, vector<8x1x256xf32>,
    %cst_37 = arith.constant 1.000000e+00 : f32
    %76 = vector.broadcast %cst_37 : f32 to vector<8x256xf32>
    %c0_38 = arith.constant 0 : index
    %c2_39 = arith.constant 2 : index
    %c0_40 = arith.constant 0 : index
    %77 = vector.load %arg3[%c0_38, %c2_39, %c0_40] : memref<8x3x256xf32, #tpu.memory_space<vmem>>, vector<8x1x256xf32>
    %78 = vector.shape_cast %77 : vector<8x1x256xf32> to vector<8x256xf32>
    %79 = vector.shape_cast %76 : vector<8x256xf32> to vector<8x1x256xf32>
    tpu.vector_store %arg3[%c0_38, %c2_39, %c0_40], %79 {strides = array<i32>} : memref<8x3x256xf32, #tpu.memory_space<vmem>>, vector<8x1x256xf32>,
    %cst_41 = arith.constant 0.000000e+00 : f32
    %80 = vector.broadcast %cst_41 : f32 to vector<8x1xf32>
    %81 = tpu.concatenate %7, %11, %25, %47, %51, %65, %80, %80 in 1 : vector<8x1xf32>, vector<8x1xf32>, vector<8x1xf32>, vector<8x1xf32>, vector<8x1xf32>, vector<8x1xf32>, vector<8x1xf32>, vector<8x1xf32> -> vector<8x8xf32>
    %c0_42 = arith.constant 0 : index
    %c0_43 = arith.constant 0 : index
    %82 = vector.load %arg4[%c0_42, %c0_43] : memref<8x8xf32, #tpu.memory_space<vmem>>, vector<8x8xf32>
    tpu.vector_store %arg4[%c0_42, %c0_43], %81 {strides = array<i32>} : memref<8x8xf32, #tpu.memory_space<vmem>>, vector<8x8xf32>,
    return
  }
  func.func @transform_0(%arg0: i32) -> (i32, i32, i32) {
    %c0_i32 = arith.constant 0 : i32
    %c0_i32_0 = arith.constant 0 : i32
    %c0_i32_1 = arith.constant 0 : i32
    return %c0_i32, %arg0, %c0_i32_0 : i32, i32, i32
  }
  func.func @transform_1(%arg0: i32) -> (i32, i32, i32) {
    %c0_i32 = arith.constant 0 : i32
    %c0_i32_0 = arith.constant 0 : i32
    %c0_i32_1 = arith.constant 0 : i32
    return %arg0, %c0_i32, %c0_i32_0 : i32, i32, i32
  }
  func.func @transform_2(%arg0: i32) -> (i32, i32, i32) {
    %c0_i32 = arith.constant 0 : i32
    %c0_i32_0 = arith.constant 0 : i32
    %c0_i32_1 = arith.constant 0 : i32
    return %arg0, %c0_i32, %c0_i32_0 : i32, i32, i32
  }
  func.func @transform_3(%arg0: i32) -> (i32, i32) {
    %c0_i32 = arith.constant 0 : i32
    %c0_i32_0 = arith.constant 0 : i32
    return %arg0, %c0_i32 : i32, i32
  }
}

</mosaic_0001>

<llo_original>
// kernel: normalize_and_expand.1
$region0: #{normalize_and_expand.1}
  #allocation0 [shape = 'u32[]', space=smem, size = 0x4, offset = 0x4, fixed_abs, tag = 'smem constant byte address 0x4 - core index']
  #allocation1 [shape = 'u32[144,128]{1,0:T(1,128)}', space=vmem, size = 0x12000, scoped, tag = 'internal scratch']
  %s0 = inlined_call_operand.vmem [shape: f32[4,32,256], index: 0, kind: input, shape index: {}]
  %s1 = inlined_call_operand.vmem [shape: f32[32,3,256], index: 1, kind: output, shape index: {0}]
  %s2 = inlined_call_operand.vmem [shape: f32[32,3,256], index: 2, kind: output, shape index: {1}]
  %s3 = inlined_call_operand.vmem [shape: f32[32,8], index: 3, kind: output, shape index: {2}]
  %4 = xla_tuple %s1, %s2, %s3
  %s5 = sld [smem:[#allocation0]]
  $region76: #{normalize_and_expand.1} parent=0
    _
  %s7 = ssub.s32 1, %s5
  %s8 = scalar_select 0, %s7, %s5
  $region1: #{normalize_and_expand.1} parent=0
    #allocation2 [shape = 'u8[65536]{0}', space=vmem, size = 0x10000, scoped, tag = 'input window, operand 0']
    loop: start=0, step=1, limit=6
    $region2: #{normalize_and_expand.1} parent=1 // loop_pre_header
      _
    $region3: #{normalize_and_expand.1} parent=1 // loop_header
      %s10 = sphi 0, %s14
      %p11 = scmp.ge.s32.totalorder %s10, 6
      %s20 = sphi 0, %s22
      %s23 = sphi 0, %s20
      %s24 = sphi 0, %s23
      %s40 = sphi 0, %s24
      %s46 = sphi 0, %s48
      %s49 = sphi 0, %s46
      %s50 = sphi 0, %s49
      %s66 = sphi 0, %s50
      %s72 = sphi 0, %s74
      %s75 = sphi 0, %s72
      %s76 = sphi 0, %s75
      %s92 = sphi 0, %s76
      %s98 = sphi 0, %s100
      %s101 = sphi 0, %s98
      %s102 = sphi 0, %s101
      %s118 = sphi 0, %s102
    $region4: #{normalize_and_expand.1} parent=1 // loop_header_branch
      %13 = sbr.rel (%p11) target = $region8
    $region5: #{normalize_and_expand.1} parent=1 // loop_body
      %s15 = ssub.s32 %s10, 1
      %s16 = ssub.s32 %s10, 2
      %s17 = sadd.s32 %s10, 1
      %s18 = ssub.s32 %s10, %s17
      %p19 = scmp.eq.s32.totalorder %s18, 0
      %s21 = sadd.s32 %s20, 1
      %s22 = scalar_select %p19, %s20, %s21
      %p25 = pneg %p19
      %p26 = scmp.eq.s32.totalorder %s10, 3
      %p27 = por %p25, %p26
      %p28 = scmp.ne.s32.totalorder %s20, %s23
      %p29 = scmp.eq.s32.totalorder %s10, 0
      %p30 = por %p28, %p29
      %p31 = scmp.ne.s32.totalorder %s20, %s23
      %p32 = scmp.eq.s32.totalorder %s15, 3
      %p33 = por %p31, %p32
      %p34 = scmp.ne.s32.totalorder %s23, %s24
      %p35 = scmp.eq.s32.totalorder %s15, 0
      %p36 = por %p34, %p35
      %p37 = scmp.ne.s32.totalorder %s23, %s24
      %p38 = scmp.eq.s32.totalorder %s16, 3
      %p39 = por %p37, %p38
      %p41 = scmp.ne.s32.totalorder %s24, %s40
      %p42 = scmp.eq.s32.totalorder %s16, 0
      %p43 = por %p41, %p42
      %s44 = ssub.s32 %s10, %s17
      %p45 = scmp.eq.s32.totalorder %s44, 0
      %s47 = sadd.s32 %s46, 1
      %s48 = scalar_select %p45, %s46, %s47
      %p51 = pneg %p45
      %p52 = scmp.eq.s32.totalorder %s10, 3
      %p53 = por %p51, %p52
      %p54 = scmp.ne.s32.totalorder %s46, %s49
      %p55 = scmp.eq.s32.totalorder %s10, 0
      %p56 = por %p54, %p55
      %p57 = scmp.ne.s32.totalorder %s46, %s49
      %p58 = scmp.eq.s32.totalorder %s15, 3
      %p59 = por %p57, %p58
      %p60 = scmp.ne.s32.totalorder %s49, %s50
      %p61 = scmp.eq.s32.totalorder %s15, 0
      %p62 = por %p60, %p61
      %p63 = scmp.ne.s32.totalorder %s49, %s50
      %p64 = scmp.eq.s32.totalorder %s16, 3
      %p65 = por %p63, %p64
      %p67 = scmp.ne.s32.totalorder %s50, %s66
      %p68 = scmp.eq.s32.totalorder %s16, 0
      %p69 = por %p67, %p68
      %s70 = ssub.s32 %s10, %s17
      %p71 = scmp.eq.s32.totalorder %s70, 0
      %s73 = sadd.s32 %s72, 1
      %s74 = scalar_select %p71, %s72, %s73
      %p77 = pneg %p71
      %p78 = scmp.eq.s32.totalorder %s10, 3
      %p79 = por %p77, %p78
      %p80 = scmp.ne.s32.totalorder %s72, %s75
      %p81 = scmp.eq.s32.totalorder %s10, 0
      %p82 = por %p80, %p81
      %p83 = scmp.ne.s32.totalorder %s72, %s75
      %p84 = scmp.eq.s32.totalorder %s15, 3
      %p85 = por %p83, %p84
      %p86 = scmp.ne.s32.totalorder %s75, %s76
      %p87 = scmp.eq.s32.totalorder %s15, 0
      %p88 = por %p86, %p87
      %p89 = scmp.ne.s32.totalorder %s75, %s76
      %p90 = scmp.eq.s32.totalorder %s16, 3
      %p91 = por %p89, %p90
      %p93 = scmp.ne.s32.totalorder %s76, %s92
      %p94 = scmp.eq.s32.totalorder %s16, 0
      %p95 = por %p93, %p94
      %s96 = ssub.s32 %s10, %s17
      %p97 = scmp.eq.s32.totalorder %s96, 0
      %s99 = sadd.s32 %s98, 1
      %s100 = scalar_select %p97, %s98, %s99
      %p103 = pneg %p97
      %p104 = scmp.eq.s32.totalorder %s10, 3
      %p105 = por %p103, %p104
      %p106 = scmp.ne.s32.totalorder %s98, %s101
      %p107 = scmp.eq.s32.totalorder %s10, 0
      %p108 = por %p106, %p107
      %p109 = scmp.ne.s32.totalorder %s98, %s101
      %p110 = scmp.eq.s32.totalorder %s15, 3
      %p111 = por %p109, %p110
      %p112 = scmp.ne.s32.totalorder %s101, %s102
      %p113 = scmp.eq.s32.totalorder %s15, 0
      %p114 = por %p112, %p113
      %p115 = scmp.ne.s32.totalorder %s101, %s102
      %p116 = scmp.eq.s32.totalorder %s16, 3
      %p117 = por %p115, %p116
      %p119 = scmp.ne.s32.totalorder %s102, %s118
      %p120 = scmp.eq.s32.totalorder %s16, 0
      %p121 = por %p119, %p120
      %p122 = scmp.le.s32.totalorder 1, %s10
      %p123 = scmp.lt.s32.totalorder %s10, 5
      %p124 = pnand %p122, %p123
      %p125 = pneg %p124
      // Predicated region
      $region9: #{normalize_and_expand.1} parent=5 // pred_check
        _
      $region10: #{normalize_and_expand.1} parent=5 // pred_check_branch
        %127 = sbr.rel (%p124) target = $region12
      $region11: #{normalize_and_expand.1} parent=5 // pred_region
        %s128 = ssub.s32 %s10, 1
      $region12: #{normalize_and_expand.1} parent=5 // pred_fallthru
        _
      %p129 = scmp.lt.s32.totalorder %s10, 4
      // Predicated region
      $region13: #{normalize_and_expand.1} parent=5 // pred_check
        %p130 = pneg %p129
      $region14: #{normalize_and_expand.1} parent=5 // pred_check_branch
        %132 = sbr.rel (%p130) target = $region16
      $region15: #{normalize_and_expand.1} parent=5 // pred_region
        // Predicated region
        $region17: #{normalize_and_expand.1} parent=15 // pred_check
          %p133 = pneg %p30
        $region18: #{normalize_and_expand.1} parent=15 // pred_check_branch
          %135 = sbr.rel (%p133) target = $region20
        $region19: #{normalize_and_expand.1} parent=15 // pred_region
          %s136 = sand.u32 %s20, 1
          %s137 = sand.u32 %s20, 1
          %s138 = smul.addr %s137, 64
          %s139 = scalar_lea.vmem [#allocation2], %s138
          %s140 = smul.addr %s10, 2
          %s141 = smul.addr %s140, 8
          %s142 = scalar_lea.vmem %s0, %s141
          // Predicated region
          $region21: #{normalize_and_expand.1} parent=19 // pred_check
            _
          $region22: #{normalize_and_expand.1} parent=19 // pred_check_branch
            %144 = sbr.rel (0) target = $region24
          $region23: #{normalize_and_expand.1} parent=19 // pred_region
            // Predicated region
            $region25: #{normalize_and_expand.1} parent=23 // pred_check
              _
            $region26: #{normalize_and_expand.1} parent=23 // pred_check_branch
              %146 = sbr.rel (0) target = $region28
            $region27: #{normalize_and_expand.1} parent=23 // pred_region
              loop: start=0, step=1, limit=1
              $region29: #{normalize_and_expand.1} parent=27 // loop_pre_header
                _
              $region30: #{normalize_and_expand.1} parent=27 // loop_header
                %s148 = sphi 0, %s152
                %p149 = scmp.ge.s32.totalorder %s148, 1
                %s153 = sphi %s142, %s142
                %s154 = sphi %s139, %s139
              $region31: #{normalize_and_expand.1} parent=27 // loop_header_branch
                %151 = sbr.rel (%p149) target = $region35
              $region32: #{normalize_and_expand.1} parent=27 // loop_body
                %v155 = vld [vmem:[%s153] sm:$0xff]
                %156 = vst [vmem:[%s154] sm:$0xff] %v155
                %v157 = vld [vmem:[%s153 + $0x8] sm:$0xff]
                %158 = vst [vmem:[%s154 + $0x8] sm:$0xff] %v157
                %v159 = vld [vmem:[%s153 + $0x40] sm:$0xff]
                %160 = vst [vmem:[%s154 + $0x10] sm:$0xff] %v159
                %v161 = vld [vmem:[%s153 + $0x48] sm:$0xff]
                %162 = vst [vmem:[%s154 + $0x18] sm:$0xff] %v161
                %v163 = vld [vmem:[%s153 + $0x80] sm:$0xff]
                %164 = vst [vmem:[%s154 + $0x20] sm:$0xff] %v163
                %v165 = vld [vmem:[%s153 + $0x88] sm:$0xff]
                %166 = vst [vmem:[%s154 + $0x28] sm:$0xff] %v165
                %v167 = vld [vmem:[%s153 + $0xc0] sm:$0xff]
                %168 = vst [vmem:[%s154 + $0x30] sm:$0xff] %v167
                %v169 = vld [vmem:[%s153 + $0xc8] sm:$0xff]
                %170 = vst [vmem:[%s154 + $0x38] sm:$0xff] %v169
              $region33: #{normalize_and_expand.1} parent=27 // loop_footer
                %s152 = sadd.s32 1, %s148
              $region34: #{normalize_and_expand.1} parent=27 // loop_footer_branch
                %147 = sbr.rel target = $region30
              $region35: #{normalize_and_expand.1} parent=27 // loop_exit
                _
            $region28: #{normalize_and_expand.1} parent=23 // pred_fallthru
              _
            // Predicated region
            $region36: #{normalize_and_expand.1} parent=23 // pred_check
              _
            $region37: #{normalize_and_expand.1} parent=23 // pred_check_branch
              %172 = sbr.rel target = $region39
            $region38: #{normalize_and_expand.1} parent=23 // pred_region
              _
            $region39: #{normalize_and_expand.1} parent=23 // pred_fallthru
              _
          $region24: #{normalize_and_expand.1} parent=19 // pred_fallthru
            _
          %173 = vnop
        $region20: #{normalize_and_expand.1} parent=15 // pred_fallthru
          _
      $region16: #{normalize_and_expand.1} parent=5 // pred_fallthru
        _
      %p174 = scmp.le.s32.totalorder 1, %s10
      %p175 = scmp.lt.s32.totalorder %s10, 5
      %p176 = pnand %p174, %p175
      %p177 = pneg %p176
      // Predicated region
      $region40: #{normalize_and_expand.1} parent=5 // pred_check
        _
      $region41: #{normalize_and_expand.1} parent=5 // pred_check_branch
        %179 = sbr.rel (%p176) target = $region43
      $region42: #{normalize_and_expand.1} parent=5 // pred_region
        %s180 = ssub.s32 %s10, 1
        %s181 = sand.u32 %s23, 1
        %s182 = sand.u32 %s23, 1
        %s183 = smul.addr %s182, 64
        %s184 = scalar_lea.vmem [#allocation2], %s183
        // Predicated region
        $region44: #{normalize_and_expand.1} parent=42 // pred_check
          %p185 = pneg %p36
        $region45: #{normalize_and_expand.1} parent=42 // pred_check_branch
          %187 = sbr.rel (%p185) target = $region47
        $region46: #{normalize_and_expand.1} parent=42 // pred_region
          _
        $region47: #{normalize_and_expand.1} parent=42 // pred_fallthru
          _
        %s188 = sand.u32 %s23, 1
        %s189 = sand.u32 %s23, 1
        %s190 = smul.addr %s189, 64
        %s191 = scalar_lea.vmem [#allocation2], %s190
        %p192 = pneg %p36
        %p193 = pneg %p33
        %p194 = pneg %p62
        %p195 = pneg %p59
        %s196 = smul.u32 8, %s15
        %p197 = scmp.lt.s32.totalorder %s196, 31
        %s198 = scalar_select %p197, %s196, 31
        %s199 = smul.addr %s198, 2
        %s200 = smul.addr %s199, 4
        %s201 = scalar_lea.vmem %s1, %s200
        %p202 = pneg %p88
        %p203 = pneg %p85
        %s204 = smul.u32 8, %s15
        %p205 = scmp.lt.s32.totalorder %s204, 31
        %s206 = scalar_select %p205, %s204, 31
        %s207 = smul.addr %s206, 2
        %s208 = smul.addr %s207, 4
        %s209 = scalar_lea.vmem %s2, %s208
        %p210 = pneg %p114
        %p211 = pneg %p111
        %p212 = scmp.lt.s32.totalorder %s15, 3
        %s213 = scalar_select %p212, %s15, 3
        %s214 = smul.addr %s213, 8
        %s215 = scalar_lea.vmem %s3, %s214
        %s216 = smul.u32 8, %s15
        %p217 = scmp.lt.s32.totalorder %s216, 31
        %s218 = scalar_select %p217, %s216, 31
        %s219 = smul.addr %s218, 2
        %s220 = smul.addr %s219, 4
        %s221 = scalar_lea.vmem %s1, %s220
        %s222 = smul.u32 8, %s15
        %s223 = smul.u32 8, %s15
        %p224 = scmp.lt.s32.totalorder %s223, 31
        %s225 = scalar_select %p224, %s223, 31
        %s226 = smul.addr %s225, 2
        %s227 = smul.addr %s226, 4
        %s228 = scalar_lea.vmem %s2, %s227
        %s229 = smul.u32 8, %s15
        %p230 = scmp.lt.s32.totalorder %s15, 3
        %s231 = scalar_select %p230, %s15, 3
        %s232 = smul.addr %s231, 8
        %s233 = scalar_lea.vmem %s3, %s232
        %v234 = vld [vmem:[%s184] sm:$0xff]
        %v235 = vld [vmem:[%s184 + $0x8] sm:$0xff]
        %s236 = scalar_lea.vmem %s184, 16 [#allocation2]
        %v237 = vld [vmem:[%s236] sm:$0xff]
        %v238 = vld [vmem:[%s236 + $0x8] sm:$0xff]
        %v239 = vadd.f32 %v234, %v235
        %240 = vadd.xlane.f32.xlu0 %v239
        %v241 = vpop.xlane.xlu0 %240
        %v242 = vmul.f32 %v241, 0.00390625
        %v243 = vadd.f32 %v237, %v238
        %244 = vadd.xlane.f32.xlu0 %v243
        %v245 = vpop.xlane.xlu0 %244
        %v246 = vmul.f32 %v245, 0.00390625
        %v247 = vsub.f32 %v234, %v242
        %v248 = vsub.f32 %v235, %v242
        %v249 = vsub.f32 %v237, %v246
        %v250 = vsub.f32 %v238, %v246
        %v251 = vmul.f32 %v247, %v247
        %v252 = vmul.f32 %v248, %v248
        %v253 = vmul.f32 %v249, %v249
        %v254 = vmul.f32 %v250, %v250
        %v255 = vadd.f32 %v251, %v253
        %v256 = vadd.f32 %v252, %v254
        %v257 = vrsqrt.pop %v255
        %v258 = vmul.f32 %v255, %v257
        %vm259 = vcmp.eq.f32.partialorder %v255, inf
        %v260 = vsel %vm259, %v255, %v258
        %vm261 = vcmp.eq.f32.partialorder %v255, 0.0
        %v262 = vand.u32 %v255, 2147483648
        %v263 = vsel %vm261, %v262, %v260
        %v264 = vrsqrt.pop %v256
        %v265 = vmul.f32 %v256, %v264
        %vm266 = vcmp.eq.f32.partialorder %v256, inf
        %v267 = vsel %vm266, %v256, %v265
        %vm268 = vcmp.eq.f32.partialorder %v256, 0.0
        %v269 = vand.u32 %v256, 2147483648
        %v270 = vsel %vm268, %v269, %v267
        %v271 = vadd.f32 %v263, %v270
        %272 = vadd.xlane.f32.xlu0 %v271
        %v273 = vpop.xlane.xlu0 %272
        %v274 = vmul.f32 %v273, 0.00390625
        %v275 = vrcp.pop %v274
        %v276 = vmul.f32 1.0, %v275
        %v277 = vmul.f32 %v276, %v247
        %v278 = vmul.f32 %v276, %v248
        %v281 = vcombine.low %v277, %v278
        %v282 = vcombine.high %v277, %v278
        %v284 = vunpack.c.l.s4 1966171168
        %v285 = vunpack.c.0.s8 %v284
        %v286 = vlaneseq
        %v287 = vshrl.u32 %v286, 7
        %v288 = vsub.s32 %v285, %v287
        %v289 = vrot.slane %v281, %v288
        %v291 = vunpack.c.l.s4 1966171168
        %v292 = vunpack.c.0.s8 %v291
        %v293 = vlaneseq
        %v294 = vshrl.u32 %v293, 7
        %v295 = vsub.s32 %v292, %v294
        %v296 = vrot.slane %v282, %v295
        %v297 = vcombine.high %v289, %v289
        %v298 = vcombine.high %v296, %v296
        %v300 = vunpack.c.l.s4 1966171168
        %v301 = vunpack.c.0.s8 %v300
        %v302 = vlaneseq
        %v303 = vshrl.u32 %v302, 7
        %v304 = vsub.s32 %v301, %v303
        %v305 = vrot.slane %v289, %v304
        %v307 = vunpack.c.l.s4 1966171168
        %v308 = vunpack.c.0.s8 %v307
        %v309 = vlaneseq
        %v310 = vshrl.u32 %v309, 7
        %v311 = vsub.s32 %v308, %v310
        %v312 = vrot.slane %v296, %v311
        %v314 = vunpack.c.l.s4 1966171168
        %v315 = vunpack.c.0.s8 %v314
        %v316 = vlaneseq
        %v317 = vshrl.u32 %v316, 7
        %v318 = vsub.s32 %v315, %v317
        %v319 = vrot.slane %v297, %v318
        %v321 = vunpack.c.l.s4 1966171168
        %v322 = vunpack.c.0.s8 %v321
        %v323 = vlaneseq
        %v324 = vshrl.u32 %v323, 7
        %v325 = vsub.s32 %v322, %v324
        %v326 = vrot.slane %v298, %v325
        %v327 = vcombine.high %v305, %v305
        %v328 = vcombine.high %v312, %v312
        %v329 = vcombine.high %v319, %v319
        %v330 = vcombine.high %v326, %v326
        %v339 = vlaneseq
        %vm340 = vcmp.ge.s32.totalorder %v339, 0
        %vm341 = vcmp.lt.s32.totalorder %v339, 256
        %vm342 = vmand %vm340, %vm341
        %343 = vst.msk [vmem:[%s221] ss:$4 sm:$0x3] %vm342, %v305
        %s344 = scalar_lea.vmem %s221, 8
        %345 = vst.msk [vmem:[%s344] ss:$4 sm:$0x3] %vm342, %v319
        %s346 = scalar_lea.vmem %s221, 16
        %347 = vst.msk [vmem:[%s346] ss:$4 sm:$0x3] %vm342, %v327
        %s348 = scalar_lea.vmem %s221, 24
        %349 = vst.msk [vmem:[%s348] ss:$4 sm:$0x3] %vm342, %v329
        %s350 = scalar_lea.vmem %s221, 32
        %351 = vst.msk [vmem:[%s350] ss:$4 sm:$0x3] %vm342, %v312
        %s352 = scalar_lea.vmem %s221, 40
        %353 = vst.msk [vmem:[%s352] ss:$4 sm:$0x3] %vm342, %v326
        %s354 = scalar_lea.vmem %s221, 48
        %355 = vst.msk [vmem:[%s354] ss:$4 sm:$0x3] %vm342, %v328
        %s356 = scalar_lea.vmem %s221, 56
        %357 = vst.msk [vmem:[%s356] ss:$4 sm:$0x3] %vm342, %v330
        %v358 = vmul.f32 %v276, %v249
        %v359 = vmul.f32 %v276, %v250
        %v362 = vcombine.low %v358, %v359
        %v363 = vcombine.high %v358, %v359
        %v365 = vunpack.c.l.s4 1966171168
        %v366 = vunpack.c.0.s8 %v365
        %v367 = vlaneseq
        %v368 = vshrl.u32 %v367, 7
        %v369 = vsub.s32 %v366, %v368
        %v370 = vrot.slane %v362, %v369
        %v372 = vunpack.c.l.s4 1966171168
        %v373 = vunpack.c.0.s8 %v372
        %v374 = vlaneseq
        %v375 = vshrl.u32 %v374, 7
        %v376 = vsub.s32 %v373, %v375
        %v377 = vrot.slane %v363, %v376
        %v378 = vcombine.high %v370, %v370
        %v379 = vcombine.high %v377, %v377
        %v381 = vunpack.c.l.s4 1966171168
        %v382 = vunpack.c.0.s8 %v381
        %v383 = vlaneseq
        %v384 = vshrl.u32 %v383, 7
        %v385 = vsub.s32 %v382, %v384
        %v386 = vrot.slane %v370, %v385
        %v388 = vunpack.c.l.s4 1966171168
        %v389 = vunpack.c.0.s8 %v388
        %v390 = vlaneseq
        %v391 = vshrl.u32 %v390, 7
        %v392 = vsub.s32 %v389, %v391
        %v393 = vrot.slane %v377, %v392
        %v395 = vunpack.c.l.s4 1966171168
        %v396 = vunpack.c.0.s8 %v395
        %v397 = vlaneseq
        %v398 = vshrl.u32 %v397, 7
        %v399 = vsub.s32 %v396, %v398
        %v400 = vrot.slane %v378, %v399
        %v402 = vunpack.c.l.s4 1966171168
        %v403 = vunpack.c.0.s8 %v402
        %v404 = vlaneseq
        %v405 = vshrl.u32 %v404, 7
        %v406 = vsub.s32 %v403, %v405
        %v407 = vrot.slane %v379, %v406
        %v408 = vcombine.high %v386, %v386
        %v409 = vcombine.high %v393, %v393
        %v410 = vcombine.high %v400, %v400
        %v411 = vcombine.high %v407, %v407
        %s420 = scalar_lea.vmem %s221, 1
        %421 = vst.msk [vmem:[%s420] ss:$4 sm:$0x3] %vm342, %v386
        %s422 = scalar_lea.vmem %s221, 9
        %423 = vst.msk [vmem:[%s422] ss:$4 sm:$0x3] %vm342, %v400
        %s424 = scalar_lea.vmem %s221, 17
        %425 = vst.msk [vmem:[%s424] ss:$4 sm:$0x3] %vm342, %v408
        %s426 = scalar_lea.vmem %s221, 25
        %427 = vst.msk [vmem:[%s426] ss:$4 sm:$0x3] %vm342, %v410
        %s428 = scalar_lea.vmem %s221, 33
        %429 = vst.msk [vmem:[%s428] ss:$4 sm:$0x3] %vm342, %v393
        %s430 = scalar_lea.vmem %s221, 41
        %431 = vst.msk [vmem:[%s430] ss:$4 sm:$0x3] %vm342, %v407
        %s432 = scalar_lea.vmem %s221, 49
        %433 = vst.msk [vmem:[%s432] ss:$4 sm:$0x3] %vm342, %v409
        %s434 = scalar_lea.vmem %s221, 57
        %435 = vst.msk [vmem:[%s434] ss:$4 sm:$0x3] %vm342, %v411
        %s436 = scalar_lea.vmem %s221, 2
        %437 = vst.msk [vmem:[%s436] ss:$4 sm:$0x3] %vm342, 1.0
        %s438 = scalar_lea.vmem %s221, 10
        %439 = vst.msk [vmem:[%s438] ss:$4 sm:$0x3] %vm342, 1.0
        %s440 = scalar_lea.vmem %s221, 18
        %441 = vst.msk [vmem:[%s440] ss:$4 sm:$0x3] %vm342, 1.0
        %s442 = scalar_lea.vmem %s221, 26
        %443 = vst.msk [vmem:[%s442] ss:$4 sm:$0x3] %vm342, 1.0
        %s444 = scalar_lea.vmem %s221, 34
        %445 = vst.msk [vmem:[%s444] ss:$4 sm:$0x3] %vm342, 1.0
        %s446 = scalar_lea.vmem %s221, 42
        %447 = vst.msk [vmem:[%s446] ss:$4 sm:$0x3] %vm342, 1.0
        %s448 = scalar_lea.vmem %s221, 50
        %449 = vst.msk [vmem:[%s448] ss:$4 sm:$0x3] %vm342, 1.0
        %s450 = scalar_lea.vmem %s221, 58
        %451 = vst.msk [vmem:[%s450] ss:$4 sm:$0x3] %vm342, 1.0
        %s452 = scalar_lea.vmem %s184, 32 [#allocation2]
        %v453 = vld [vmem:[%s452] sm:$0xff]
        %v454 = vld [vmem:[%s452 + $0x8] sm:$0xff]
        %s455 = scalar_lea.vmem %s184, 48 [#allocation2]
        %v456 = vld [vmem:[%s455] sm:$0xff]
        %v457 = vld [vmem:[%s455 + $0x8] sm:$0xff]
        %v458 = vadd.f32 %v453, %v454
        %459 = vadd.xlane.f32.xlu0 %v458
        %v460 = vpop.xlane.xlu0 %459
        %v461 = vmul.f32 %v460, 0.00390625
        %v462 = vadd.f32 %v456, %v457
        %463 = vadd.xlane.f32.xlu0 %v462
        %v464 = vpop.xlane.xlu0 %463
        %v465 = vmul.f32 %v464, 0.00390625
        %v466 = vsub.f32 %v453, %v461
        %v467 = vsub.f32 %v454, %v461
        %v468 = vsub.f32 %v456, %v465
        %v469 = vsub.f32 %v457, %v465
        %v470 = vmul.f32 %v466, %v466
        %v471 = vmul.f32 %v467, %v467
        %v472 = vmul.f32 %v468, %v468
        %v473 = vmul.f32 %v469, %v469
        %v474 = vadd.f32 %v470, %v472
        %v475 = vadd.f32 %v471, %v473
        %v476 = vrsqrt.pop %v474
        %v477 = vmul.f32 %v474, %v476
        %vm478 = vcmp.eq.f32.partialorder %v474, inf
        %v479 = vsel %vm478, %v474, %v477
        %vm480 = vcmp.eq.f32.partialorder %v474, 0.0
        %v481 = vand.u32 %v474, 2147483648
        %v482 = vsel %vm480, %v481, %v479
        %v483 = vrsqrt.pop %v475
        %v484 = vmul.f32 %v475, %v483
        %vm485 = vcmp.eq.f32.partialorder %v475, inf
        %v486 = vsel %vm485, %v475, %v484
        %vm487 = vcmp.eq.f32.partialorder %v475, 0.0
        %v488 = vand.u32 %v475, 2147483648
        %v489 = vsel %vm487, %v488, %v486
        %v490 = vadd.f32 %v482, %v489
        %491 = vadd.xlane.f32.xlu0 %v490
        %v492 = vpop.xlane.xlu0 %491
        %v493 = vmul.f32 %v492, 0.00390625
        %v494 = vrcp.pop %v493
        %v495 = vmul.f32 1.0, %v494
        %v496 = vmul.f32 %v495, %v466
        %v497 = vmul.f32 %v495, %v467
        %v500 = vcombine.low %v496, %v497
        %v501 = vcombine.high %v496, %v497
        %v503 = vunpack.c.l.s4 1966171168
        %v504 = vunpack.c.0.s8 %v503
        %v505 = vlaneseq
        %v506 = vshrl.u32 %v505, 7
        %v507 = vsub.s32 %v504, %v506
        %v508 = vrot.slane %v500, %v507
        %v510 = vunpack.c.l.s4 1966171168
        %v511 = vunpack.c.0.s8 %v510
        %v512 = vlaneseq
        %v513 = vshrl.u32 %v512, 7
        %v514 = vsub.s32 %v511, %v513
        %v515 = vrot.slane %v501, %v514
        %v516 = vcombine.high %v508, %v508
        %v517 = vcombine.high %v515, %v515
        %v519 = vunpack.c.l.s4 1966171168
        %v520 = vunpack.c.0.s8 %v519
        %v521 = vlaneseq
        %v522 = vshrl.u32 %v521, 7
        %v523 = vsub.s32 %v520, %v522
        %v524 = vrot.slane %v508, %v523
        %v526 = vunpack.c.l.s4 1966171168
        %v527 = vunpack.c.0.s8 %v526
        %v528 = vlaneseq
        %v529 = vshrl.u32 %v528, 7
        %v530 = vsub.s32 %v527, %v529
        %v531 = vrot.slane %v515, %v530
        %v533 = vunpack.c.l.s4 1966171168
        %v534 = vunpack.c.0.s8 %v533
        %v535 = vlaneseq
        %v536 = vshrl.u32 %v535, 7
        %v537 = vsub.s32 %v534, %v536
        %v538 = vrot.slane %v516, %v537
        %v540 = vunpack.c.l.s4 1966171168
        %v541 = vunpack.c.0.s8 %v540
        %v542 = vlaneseq
        %v543 = vshrl.u32 %v542, 7
        %v544 = vsub.s32 %v541, %v543
        %v545 = vrot.slane %v517, %v544
        %v546 = vcombine.high %v524, %v524
        %v547 = vcombine.high %v531, %v531
        %v548 = vcombine.high %v538, %v538
        %v549 = vcombine.high %v545, %v545
        %558 = vst.msk [vmem:[%s228] ss:$4 sm:$0x3] %vm342, %v524
        %s559 = scalar_lea.vmem %s228, 8
        %560 = vst.msk [vmem:[%s559] ss:$4 sm:$0x3] %vm342, %v538
        %s561 = scalar_lea.vmem %s228, 16
        %562 = vst.msk [vmem:[%s561] ss:$4 sm:$0x3] %vm342, %v546
        %s563 = scalar_lea.vmem %s228, 24
        %564 = vst.msk [vmem:[%s563] ss:$4 sm:$0x3] %vm342, %v548
        %s565 = scalar_lea.vmem %s228, 32
        %566 = vst.msk [vmem:[%s565] ss:$4 sm:$0x3] %vm342, %v531
        %s567 = scalar_lea.vmem %s228, 40
        %568 = vst.msk [vmem:[%s567] ss:$4 sm:$0x3] %vm342, %v545
        %s569 = scalar_lea.vmem %s228, 48
        %570 = vst.msk [vmem:[%s569] ss:$4 sm:$0x3] %vm342, %v547
        %s571 = scalar_lea.vmem %s228, 56
        %572 = vst.msk [vmem:[%s571] ss:$4 sm:$0x3] %vm342, %v549
        %v573 = vmul.f32 %v495, %v468
        %v574 = vmul.f32 %v495, %v469
        %v577 = vcombine.low %v573, %v574
        %v578 = vcombine.high %v573, %v574
        %v580 = vunpack.c.l.s4 1966171168
        %v581 = vunpack.c.0.s8 %v580
        %v582 = vlaneseq
        %v583 = vshrl.u32 %v582, 7
        %v584 = vsub.s32 %v581, %v583
        %v585 = vrot.slane %v577, %v584
        %v587 = vunpack.c.l.s4 1966171168
        %v588 = vunpack.c.0.s8 %v587
        %v589 = vlaneseq
        %v590 = vshrl.u32 %v589, 7
        %v591 = vsub.s32 %v588, %v590
        %v592 = vrot.slane %v578, %v591
        %v593 = vcombine.high %v585, %v585
        %v594 = vcombine.high %v592, %v592
        %v596 = vunpack.c.l.s4 1966171168
        %v597 = vunpack.c.0.s8 %v596
        %v598 = vlaneseq
        %v599 = vshrl.u32 %v598, 7
        %v600 = vsub.s32 %v597, %v599
        %v601 = vrot.slane %v585, %v600
        %v603 = vunpack.c.l.s4 1966171168
        %v604 = vunpack.c.0.s8 %v603
        %v605 = vlaneseq
        %v606 = vshrl.u32 %v605, 7
        %v607 = vsub.s32 %v604, %v606
        %v608 = vrot.slane %v592, %v607
        %v610 = vunpack.c.l.s4 1966171168
        %v611 = vunpack.c.0.s8 %v610
        %v612 = vlaneseq
        %v613 = vshrl.u32 %v612, 7
        %v614 = vsub.s32 %v611, %v613
        %v615 = vrot.slane %v593, %v614
        %v617 = vunpack.c.l.s4 1966171168
        %v618 = vunpack.c.0.s8 %v617
        %v619 = vlaneseq
        %v620 = vshrl.u32 %v619, 7
        %v621 = vsub.s32 %v618, %v620
        %v622 = vrot.slane %v594, %v621
        %v623 = vcombine.high %v601, %v601
        %v624 = vcombine.high %v608, %v608
        %v625 = vcombine.high %v615, %v615
        %v626 = vcombine.high %v622, %v622
        %s635 = scalar_lea.vmem %s228, 1
        %636 = vst.msk [vmem:[%s635] ss:$4 sm:$0x3] %vm342, %v601
        %s637 = scalar_lea.vmem %s228, 9
        %638 = vst.msk [vmem:[%s637] ss:$4 sm:$0x3] %vm342, %v615
        %s639 = scalar_lea.vmem %s228, 17
        %640 = vst.msk [vmem:[%s639] ss:$4 sm:$0x3] %vm342, %v623
        %s641 = scalar_lea.vmem %s228, 25
        %642 = vst.msk [vmem:[%s641] ss:$4 sm:$0x3] %vm342, %v625
        %s643 = scalar_lea.vmem %s228, 33
        %644 = vst.msk [vmem:[%s643] ss:$4 sm:$0x3] %vm342, %v608
        %s645 = scalar_lea.vmem %s228, 41
        %646 = vst.msk [vmem:[%s645] ss:$4 sm:$0x3] %vm342, %v622
        %s647 = scalar_lea.vmem %s228, 49
        %648 = vst.msk [vmem:[%s647] ss:$4 sm:$0x3] %vm342, %v624
        %s649 = scalar_lea.vmem %s228, 57
        %650 = vst.msk [vmem:[%s649] ss:$4 sm:$0x3] %vm342, %v626
        %s651 = scalar_lea.vmem %s228, 2
        %652 = vst.msk [vmem:[%s651] ss:$4 sm:$0x3] %vm342, 1.0
        %s653 = scalar_lea.vmem %s228, 10
        %654 = vst.msk [vmem:[%s653] ss:$4 sm:$0x3] %vm342, 1.0
        %s655 = scalar_lea.vmem %s228, 18
        %656 = vst.msk [vmem:[%s655] ss:$4 sm:$0x3] %vm342, 1.0
        %s657 = scalar_lea.vmem %s228, 26
        %658 = vst.msk [vmem:[%s657] ss:$4 sm:$0x3] %vm342, 1.0
        %s659 = scalar_lea.vmem %s228, 34
        %660 = vst.msk [vmem:[%s659] ss:$4 sm:$0x3] %vm342, 1.0
        %s661 = scalar_lea.vmem %s228, 42
        %662 = vst.msk [vmem:[%s661] ss:$4 sm:$0x3] %vm342, 1.0
        %s663 = scalar_lea.vmem %s228, 50
        %664 = vst.msk [vmem:[%s663] ss:$4 sm:$0x3] %vm342, 1.0
        %s665 = scalar_lea.vmem %s228, 58
        %666 = vst.msk [vmem:[%s665] ss:$4 sm:$0x3] %vm342, 1.0
        %vm667 = vcmask 7168
        %v668 = vsel %vm667, %v242, %v246
        %vm669 = vcmask 15360
        %v670 = vsel %vm669, %v668, %v276
        %vm671 = vcmask 23552
        %v672 = vsel %vm671, %v670, %v461
        %vm673 = vcmask 31744
        %v674 = vsel %vm673, %v672, %v465
        %vm675 = vcmask 39936
        %v676 = vsel %vm675, %v674, %v495
        %vm677 = vcmask 48128
        %v678 = vsel %vm677, %v676, 0.0
        %vm679 = vcmask 56320
        %v680 = vsel %vm679, %v678, 0.0
        %vm681 = vcmask 64512
        %682 = vst.msk [vmem:[%s233] sm:$0xff] %vm681, %v680
        %s683 = smul.u32 8, %s15
        %p684 = scmp.lt.s32.totalorder %s683, 31
        %s685 = scalar_select %p684, %s683, 31
        %s686 = smul.addr %s685, 2
        %s687 = smul.addr %s686, 4
        %s688 = scalar_lea.vmem %s1, %s687
        %s689 = smul.u32 8, %s15
        %p690 = scmp.lt.s32.totalorder %s689, 31
        %s691 = scalar_select %p690, %s689, 31
        %s692 = smul.addr %s691, 2
        %s693 = smul.addr %s692, 4
        %s694 = scalar_lea.vmem %s2, %s693
        %p695 = scmp.lt.s32.totalorder %s15, 3
        %s696 = scalar_select %p695, %s15, 3
        %s697 = smul.addr %s696, 8
        %s698 = scalar_lea.vmem %s3, %s697
        // Predicated region
        $region48: #{normalize_and_expand.1} parent=42 // pred_check
          %p699 = pneg %p59
        $region49: #{normalize_and_expand.1} parent=42 // pred_check_branch
          %701 = sbr.rel (%p699) target = $region51
        $region50: #{normalize_and_expand.1} parent=42 // pred_region
          %s702 = smul.u32 8, %s15
        $region51: #{normalize_and_expand.1} parent=42 // pred_fallthru
          _
        // Predicated region
        $region52: #{normalize_and_expand.1} parent=42 // pred_check
          %p703 = pneg %p85
        $region53: #{normalize_and_expand.1} parent=42 // pred_check_branch
          %705 = sbr.rel (%p703) target = $region55
        $region54: #{normalize_and_expand.1} parent=42 // pred_region
          %s706 = smul.u32 8, %s15
        $region55: #{normalize_and_expand.1} parent=42 // pred_fallthru
          _
        // Predicated region
        $region56: #{normalize_and_expand.1} parent=42 // pred_check
          %p707 = pneg %p111
        $region57: #{normalize_and_expand.1} parent=42 // pred_check_branch
          %709 = sbr.rel (%p707) target = $region59
        $region58: #{normalize_and_expand.1} parent=42 // pred_region
          _
        $region59: #{normalize_and_expand.1} parent=42 // pred_fallthru
          _
      $region43: #{normalize_and_expand.1} parent=5 // pred_fallthru
        _
      %p710 = scmp.le.s32.totalorder 2, %s10
      // Predicated region
      $region60: #{normalize_and_expand.1} parent=5 // pred_check
        %p711 = pneg %p710
      $region61: #{normalize_and_expand.1} parent=5 // pred_check_branch
        %713 = sbr.rel (%p711) target = $region63
      $region62: #{normalize_and_expand.1} parent=5 // pred_region
        %s714 = ssub.s32 %s10, 2
        // Predicated region
        $region64: #{normalize_and_expand.1} parent=62 // pred_check
          %p715 = pneg %p65
        $region65: #{normalize_and_expand.1} parent=62 // pred_check_branch
          %717 = sbr.rel (%p715) target = $region67
        $region66: #{normalize_and_expand.1} parent=62 // pred_region
          %s718 = smul.u32 8, %s16
          %p719 = scmp.lt.s32.totalorder %s718, 31
          %s720 = scalar_select %p719, %s718, 31
          %s721 = smul.addr %s720, 2
          %s722 = smul.addr %s721, 4
          %s723 = scalar_lea.vmem %s1, %s722
        $region67: #{normalize_and_expand.1} parent=62 // pred_fallthru
          _
        // Predicated region
        $region68: #{normalize_and_expand.1} parent=62 // pred_check
          %p724 = pneg %p91
        $region69: #{normalize_and_expand.1} parent=62 // pred_check_branch
          %726 = sbr.rel (%p724) target = $region71
        $region70: #{normalize_and_expand.1} parent=62 // pred_region
          %s727 = smul.u32 8, %s16
          %p728 = scmp.lt.s32.totalorder %s727, 31
          %s729 = scalar_select %p728, %s727, 31
          %s730 = smul.addr %s729, 2
          %s731 = smul.addr %s730, 4
          %s732 = scalar_lea.vmem %s2, %s731
        $region71: #{normalize_and_expand.1} parent=62 // pred_fallthru
          _
        // Predicated region
        $region72: #{normalize_and_expand.1} parent=62 // pred_check
          %p733 = pneg %p117
        $region73: #{normalize_and_expand.1} parent=62 // pred_check_branch
          %735 = sbr.rel (%p733) target = $region75
        $region74: #{normalize_and_expand.1} parent=62 // pred_region
          %p736 = scmp.lt.s32.totalorder %s16, 3
          %s737 = scalar_select %p736, %s16, 3
          %s738 = smul.addr %s737, 8
          %s739 = scalar_lea.vmem %s3, %s738
        $region75: #{normalize_and_expand.1} parent=62 // pred_fallthru
          _
      $region63: #{normalize_and_expand.1} parent=5 // pred_fallthru
        _
    $region6: #{normalize_and_expand.1} parent=1 // loop_footer
      %s14 = sadd.s32 1, %s10
    $region7: #{normalize_and_expand.1} parent=1 // loop_footer_branch
      %9 = sbr.rel target = $region3
    $region8: #{normalize_and_expand.1} parent=1 // loop_exit
      _

</llo_original>
